<compile_context>
chip_gen: v6e
topology: v6e:2x2x1
jax: 0.10.0
libtpu: 0.0.40
codegen_flags: <defaults>
</compile_context>

<pallas_src>
import math

import jax
import jax.numpy as jnp
from jax import lax
from jax.experimental import pallas as pl
from jax.experimental.pallas import tpu as pltpu


def _choose_block(dim, preferred):
    """Largest tile <= preferred that divides `dim` and is a multiple of 8."""
    if dim <= preferred:
        return dim
    for b in range(preferred, 7, -8):
        if dim % b == 0:
            return b
    return dim  # fall back to the full (unblocked) dimension


# -----------------------------------------------------------------------------
# Kernel 1: per-head QKV projection.
# -----------------------------------------------------------------------------
def _make_qkv_kernel():
    def kernel(x_ref, w_ref, b_ref, q_ref, k_ref, v_ref):
        # x_ref: (1, bt, C)   w_ref: (3, 1, C, D)   b_ref: (3, 1, 1, D) f32
        x = x_ref[0]                                        # (bt, C) compute dtype
        for i, out_ref in enumerate((q_ref, k_ref, v_ref)):
            acc = jnp.dot(x, w_ref[i, 0],
                          preferred_element_type=jnp.float32)   # (bt, D) f32
            acc = acc + b_ref[i, 0]                              # (1, D) bias, f32
            out_ref[0, 0] = acc.astype(out_ref.dtype)
    return kernel


# -----------------------------------------------------------------------------
# Kernel 2: flash attention (online softmax) fused with the output projection.
# -----------------------------------------------------------------------------
def _make_flash_kernel(block_q, block_k, D, compute_dtype):
    scale = 1.0 / math.sqrt(D)
    NEG = -1e30  # large negative (not -inf): masked scores underflow to 0 in exp

    def kernel(q_ref, k_ref, v_ref, wproj_ref, bproj_ref, o_ref,
               m_sc, l_sc, acc_sc, out_sc):
        qi = pl.program_id(1)
        h = pl.program_id(2)
        kj = pl.program_id(3)
        n_heads = pl.num_programs(2)
        n_kv = pl.num_programs(3)

        q_start = qi * block_q
        k_start = kj * block_k

        # ---- reset online-softmax state at the first key tile ----
        @pl.when(kj == 0)
        def _():
            m_sc[...] = jnp.full((block_q, 1), -jnp.inf, jnp.float32)
            l_sc[...] = jnp.zeros((block_q, 1), jnp.float32)
            acc_sc[...] = jnp.zeros((block_q, D), jnp.float32)

        def scores():
            # (bq, D) x (bk, D)^T -> (bq, bk), f32 accumulation on the MXU.
            s = lax.dot_general(q_ref[0, 0], k_ref[0, 0],
                                (((1,), (1,)), ((), ())),
                                preferred_element_type=jnp.float32)
            return s * scale

        def online_update(s):
            m_prev = m_sc[...]
            m_new = jnp.maximum(m_prev, jnp.max(s, axis=-1, keepdims=True))
            alpha = jnp.exp(m_prev - m_new)
            p = jnp.exp(s - m_new)
            l_sc[...] = alpha * l_sc[...] + jnp.sum(p, axis=-1, keepdims=True)
            pv = jnp.dot(p.astype(compute_dtype), v_ref[0, 0],
                         preferred_element_type=jnp.float32)
            acc_sc[...] = alpha * acc_sc[...] + pv
            m_sc[...] = m_new

        # ---- key tiles strictly below the causal diagonal: no mask needed ----
        @pl.when(k_start + (block_k - 1) <= q_start)
        def _():
            online_update(scores())

        # ---- key tiles straddling the diagonal: apply the iota mask ----
        @pl.when(jnp.logical_and(k_start + (block_k - 1) > q_start,
                                 k_start < q_start + block_q))
        def _():
            s = scores()
            rows = q_start + lax.broadcasted_iota(jnp.int32, (block_q, block_k), 0)
            cols = k_start + lax.broadcasted_iota(jnp.int32, (block_q, block_k), 1)
            online_update(jnp.where(cols <= rows, s, NEG))

        # (key tiles entirely above the diagonal: no compute here, and the clamped
        #  index_map means no DMA either.)

        # ---- epilogue at the last key tile: normalize + fuse output projection ----
        @pl.when(kj == n_kv - 1)
        def _():
            attn = acc_sc[...] * pl.reciprocal(l_sc[...], approx=True)  # (bq, D) f32
            d0 = pl.multiple_of(h * D, D)
            wp_h = wproj_ref[pl.ds(d0, D), :]                            # (D, C)
            contrib = jnp.dot(attn.astype(compute_dtype), wp_h,
                              preferred_element_type=jnp.float32)        # (bq, C) f32

            @pl.when(h == 0)
            def _():
                out_sc[...] = contrib + bproj_ref[...]

            @pl.when(h > 0)
            def _():
                out_sc[...] = out_sc[...] + contrib

            @pl.when(h == n_heads - 1)
            def _():
                o_ref[0] = out_sc[...].astype(o_ref.dtype)

    return kernel


# -----------------------------------------------------------------------------
# Wrapper
# -----------------------------------------------------------------------------
def causal_self_attention(x, w_qkv, b_qkv, w_proj, b_proj, n_head, *,
                          compute_dtype=jnp.bfloat16,
                          block_q=None, block_k=None, block_t=None,
                          vmem_limit_bytes=48 * 1024 * 1024):
    B, T, C = x.shape
    assert C % n_head == 0
    H = n_head
    D = C // H

    block_t = block_t or _choose_block(T, 256)
    block_q = block_q or _choose_block(T, 256)
    block_k = block_k or _choose_block(T, 256)

    cbytes = jnp.dtype(compute_dtype).itemsize
    obytes = jnp.dtype(x.dtype).itemsize

    # ---- wrapper-side layout plumbing (done once, outside the hot loop) ----
    x_c = x.astype(compute_dtype)
    w3 = w_qkv.reshape(C, 3, H, D).transpose(1, 2, 0, 3).astype(compute_dtype)  # (3,H,C,D)
    b3 = b_qkv.reshape(3, H, 1, D).astype(jnp.float32)                          # (3,H,1,D)
    wp = w_proj.astype(compute_dtype)                                           # (C, C)
    bp = b_proj.reshape(1, C).astype(jnp.float32)                               # (1, C)

    # ------------------------- kernel 1: QKV projection -------------------------
    qkv_cost = pl.CostEstimate(
        flops=int(2 * B * T * C * 3 * C),
        transcendentals=0,
        bytes_accessed=int(B * T * C * cbytes + 3 * C * C * cbytes
                           + 3 * C * 4 + 3 * B * T * C * cbytes))

    head_spec = pl.BlockSpec((1, 1, block_t, D), lambda b, t, h: (b, h, t, 0))
    q, k, v = pl.pallas_call(
        _make_qkv_kernel(),
        out_shape=(jax.ShapeDtypeStruct((B, H, T, D), compute_dtype),
                   jax.ShapeDtypeStruct((B, H, T, D), compute_dtype),
                   jax.ShapeDtypeStruct((B, H, T, D), compute_dtype)),
        grid_spec=pltpu.PrefetchScalarGridSpec(
            num_scalar_prefetch=0,
            grid=(B, T // block_t, H),
            in_specs=[
                pl.BlockSpec((1, block_t, C), lambda b, t, h: (b, t, 0)),   # x (resident over h)
                pl.BlockSpec((3, 1, C, D), lambda b, t, h: (0, h, 0, 0)),   # W_qkv head-major
                pl.BlockSpec((3, 1, 1, D), lambda b, t, h: (0, h, 0, 0)),   # b_qkv head-major
            ],
            out_specs=(head_spec, head_spec, head_spec),
        ),
        compiler_params=pltpu.CompilerParams(
            dimension_semantics=("parallel", "parallel", "parallel"),
            vmem_limit_bytes=vmem_limit_bytes),
        cost_estimate=qkv_cost,
    )(x_c, w3, b3)

    # --------------- kernel 2: flash attention + fused output proj ---------------
    nq = T // block_q
    nk = T // block_k

    def q_index(b, qi, h, kj):
        return (b, h, qi, 0)

    def kv_index(b, qi, h, kj):
        # Clamp: key tiles entirely above the causal diagonal map to the last
        # needed tile, so skipped steps re-use the resident block (no DMA).
        last = (qi * block_q + block_q - 1) // block_k
        return (b, h, jnp.minimum(kj, last), 0)

    flash_cost = pl.CostEstimate(
        flops=int(4 * B * H * T * T * D + 2 * B * T * C * C),
        transcendentals=int(B * H * T * T),
        bytes_accessed=int(3 * B * T * C * cbytes + C * C * cbytes + C * 4
                           + B * T * C * obytes))

    out = pl.pallas_call(
        _make_flash_kernel(block_q, block_k, D, compute_dtype),
        out_shape=jax.ShapeDtypeStruct((B, T, C), x.dtype),
        grid_spec=pltpu.PrefetchScalarGridSpec(
            num_scalar_prefetch=0,
            grid=(B, nq, H, nk),
            in_specs=[
                pl.BlockSpec((1, 1, block_q, D), q_index),
                pl.BlockSpec((1, 1, block_k, D), kv_index),
                pl.BlockSpec((1, 1, block_k, D), kv_index),
                pl.BlockSpec((C, C), lambda b, qi, h, kj: (0, 0)),   # W_proj (resident)
                pl.BlockSpec((1, C), lambda b, qi, h, kj: (0, 0)),   # b_proj (resident)
            ],
            out_specs=pl.BlockSpec((1, block_q, C), lambda b, qi, h, kj: (b, qi, 0)),
            scratch_shapes=[
                pltpu.VMEM((block_q, 1), jnp.float32),   # running max
                pltpu.VMEM((block_q, 1), jnp.float32),   # running sum
                pltpu.VMEM((block_q, D), jnp.float32),   # attention accumulator
                pltpu.VMEM((block_q, C), jnp.float32),   # fused-projection accumulator
            ],
        ),
        compiler_params=pltpu.CompilerParams(
            dimension_semantics=("parallel", "parallel", "arbitrary", "arbitrary"),
            vmem_limit_bytes=vmem_limit_bytes),
        cost_estimate=flash_cost,
    )(q, k, v, wp, bp)

    return out


# -----------------------------------------------------------------------------
# Pure-JAX reference
# -----------------------------------------------------------------------------
def reference(x, w_qkv, b_qkv, w_proj, b_proj, n_head):
    B, T, C = x.shape
    D = C // n_head
    qkv = jnp.einsum('btc,cf->btf', x, w_qkv) + b_qkv
    q, k, v = jnp.split(qkv, 3, axis=-1)
    q = q.reshape(B, T, n_head, D).transpose(0, 2, 1, 3)
    k = k.reshape(B, T, n_head, D).transpose(0, 2, 1, 3)
    v = v.reshape(B, T, n_head, D).transpose(0, 2, 1, 3)
    s = jnp.einsum('bhqd,bhkd->bhqk', q, k) / math.sqrt(D)
    mask = jnp.tril(jnp.ones((T, T), dtype=bool))
    s = jnp.where(mask[None, None], s, -jnp.inf)
    p = jax.nn.softmax(s, axis=-1)
    y = jnp.einsum('bhqk,bhkd->bhqd', p, v)
    y = y.transpose(0, 2, 1, 3).reshape(B, T, C)
    return jnp.einsum('btc,cd->btd', y, w_proj) + b_proj


if __name__ == "__main__":
    # Small config consistent with the module: n_embd % n_head == 0.
    B, T, C, n_head = 2, 8, 32, 4

    key = jax.random.PRNGKey(0)
    k_x, k_wq, k_bq, k_wp, k_bp = jax.random.split(key, 5)

    bound = 1.0 / math.sqrt(C)
    x = jax.random.normal(k_x, (B, T, C), dtype=jnp.float32)
    w_qkv = jax.random.uniform(k_wq, (C, 3 * C), jnp.float32, -bound, bound)
    b_qkv = jax.random.uniform(k_bq, (3 * C,), jnp.float32, -bound, bound)
    w_proj = jax.random.uniform(k_wp, (C, C), jnp.float32, -bound, bound)
    b_proj = jax.random.uniform(k_bp, (C,), jnp.float32, -bound, bound)

    ref = reference(x, w_qkv, b_qkv, w_proj, b_proj, n_head)

    # f32 operand path: tight check of the flash / online-softmax algorithm.
    out_f32 = causal_self_attention(x, w_qkv, b_qkv, w_proj, b_proj, n_head,
                                    compute_dtype=jnp.float32)
    out_f32 = jax.block_until_ready(out_f32)
    assert jnp.allclose(out_f32, ref, rtol=2e-3, atol=2e-3), "f32 mismatch vs reference"

    # bf16 matmul-operand path (default fast path), looser tolerance.
    out_bf16 = causal_self_attention(x, w_qkv, b_qkv, w_proj, b_proj, n_head)
    out_bf16 = jax.block_until_ready(out_bf16)
    assert jnp.allclose(out_bf16, ref, rtol=3e-2, atol=3e-2), "bf16 mismatch vs reference"

    print("KERNEL_OK")
</pallas_src>

<mosaic_0001>
module attributes {stable_mosaic.version = 11 : i64} {
  func.func @kernel(%arg0: i32, %arg1: i32, %arg2: i32, %arg3: memref<1x8x32xf32, #tpu.memory_space<vmem>>, %arg4: memref<3x1x32x8xf32, #tpu.memory_space<vmem>>, %arg5: memref<3x1x1x8xf32, #tpu.memory_space<vmem>>, %arg6: memref<1x1x8x8xf32, #tpu.memory_space<vmem>>, %arg7: memref<1x1x8x8xf32, #tpu.memory_space<vmem>>, %arg8: memref<1x1x8x8xf32, #tpu.memory_space<vmem>>) attributes {dimension_semantics = [#tpu.dimension_semantics<parallel>, #tpu.dimension_semantics<parallel>, #tpu.dimension_semantics<parallel>], iteration_bounds = array<i64: 2, 1, 4>, scalar_prefetch = 0 : i64, scratch_operands = 0 : i64, tpu.core_type = #tpu.core_type<tc>, window_params = [{transform_indices = @transform_0, window_bounds = array<i64: 1, 8, 32>}, {transform_indices = @transform_1, window_bounds = array<i64: 3, 1, 32, 8>}, {transform_indices = @transform_2, window_bounds = array<i64: 3, 1, 1, 8>}, {transform_indices = @transform_3, window_bounds = array<i64: 1, 1, 8, 8>}, {transform_indices = @transform_4, window_bounds = array<i64: 1, 1, 8, 8>}, {transform_indices = @transform_5, window_bounds = array<i64: 1, 1, 8, 8>}]} {
    %c0 = arith.constant 0 : index
    %c0_0 = arith.constant 0 : index
    %c0_1 = arith.constant 0 : index
    %0 = vector.load %arg3[%c0, %c0_0, %c0_1] : memref<1x8x32xf32, #tpu.memory_space<vmem>>, vector<1x8x32xf32>
    %1 = vector.shape_cast %0 : vector<1x8x32xf32> to vector<8x32xf32>
    %c0_2 = arith.constant 0 : index
    %c0_3 = arith.constant 0 : index
    %c0_4 = arith.constant 0 : index
    %c0_5 = arith.constant 0 : index
    %2 = vector.load %arg4[%c0_2, %c0_3, %c0_4, %c0_5] : memref<3x1x32x8xf32, #tpu.memory_space<vmem>>, vector<1x1x32x8xf32>
    %3 = vector.shape_cast %2 : vector<1x1x32x8xf32> to vector<32x8xf32>
    %cst = arith.constant dense<0.000000e+00> : vector<8x8xf32>
    %4 = tpu.matmul %1, %3, %cst {dimension_numbers = #tpu.dot_dimension_numbers<[1], [0], [0], [1], [0, 0, 1, 1], [], []>} : vector<8x32xf32>, vector<32x8xf32>, vector<8x8xf32> -> vector<8x8xf32>
    %c0_6 = arith.constant 0 : index
    %c0_7 = arith.constant 0 : index
    %c0_8 = arith.constant 0 : index
    %c0_9 = arith.constant 0 : index
    %5 = vector.load %arg5[%c0_6, %c0_7, %c0_8, %c0_9] : memref<3x1x1x8xf32, #tpu.memory_space<vmem>>, vector<1x1x1x8xf32>
    %6 = vector.shape_cast %5 : vector<1x1x1x8xf32> to vector<1x8xf32>
    %7 = vector.broadcast %6 : vector<1x8xf32> to vector<8x8xf32>
    %8 = arith.addf %4, %7 : vector<8x8xf32>
    %c0_10 = arith.constant 0 : index
    %c0_11 = arith.constant 0 : index
    %c0_12 = arith.constant 0 : index
    %c0_13 = arith.constant 0 : index
    %9 = vector.load %arg6[%c0_10, %c0_11, %c0_12, %c0_13] : memref<1x1x8x8xf32, #tpu.memory_space<vmem>>, vector<1x1x8x8xf32>
    %10 = vector.shape_cast %9 : vector<1x1x8x8xf32> to vector<8x8xf32>
    %11 = vector.shape_cast %8 : vector<8x8xf32> to vector<1x1x8x8xf32>
    tpu.vector_store %arg6[%c0_10, %c0_11, %c0_12, %c0_13], %11 {strides = array<i32>} : memref<1x1x8x8xf32, #tpu.memory_space<vmem>>, vector<1x1x8x8xf32>,
    %c1 = arith.constant 1 : index
    %c0_14 = arith.constant 0 : index
    %c0_15 = arith.constant 0 : index
    %c0_16 = arith.constant 0 : index
    %12 = vector.load %arg4[%c1, %c0_14, %c0_15, %c0_16] : memref<3x1x32x8xf32, #tpu.memory_space<vmem>>, vector<1x1x32x8xf32>
    %13 = vector.shape_cast %12 : vector<1x1x32x8xf32> to vector<32x8xf32>
    %cst_17 = arith.constant dense<0.000000e+00> : vector<8x8xf32>
    %14 = tpu.matmul %1, %13, %cst_17 {dimension_numbers = #tpu.dot_dimension_numbers<[1], [0], [0], [1], [0, 0, 1, 1], [], []>} : vector<8x32xf32>, vector<32x8xf32>, vector<8x8xf32> -> vector<8x8xf32>
    %c1_18 = arith.constant 1 : index
    %c0_19 = arith.constant 0 : index
    %c0_20 = arith.constant 0 : index
    %c0_21 = arith.constant 0 : index
    %15 = vector.load %arg5[%c1_18, %c0_19, %c0_20, %c0_21] : memref<3x1x1x8xf32, #tpu.memory_space<vmem>>, vector<1x1x1x8xf32>
    %16 = vector.shape_cast %15 : vector<1x1x1x8xf32> to vector<1x8xf32>
    %17 = vector.broadcast %16 : vector<1x8xf32> to vector<8x8xf32>
    %18 = arith.addf %14, %17 : vector<8x8xf32>
    %c0_22 = arith.constant 0 : index
    %c0_23 = arith.constant 0 : index
    %c0_24 = arith.constant 0 : index
    %c0_25 = arith.constant 0 : index
    %19 = vector.load %arg7[%c0_22, %c0_23, %c0_24, %c0_25] : memref<1x1x8x8xf32, #tpu.memory_space<vmem>>, vector<1x1x8x8xf32>
    %20 = vector.shape_cast %19 : vector<1x1x8x8xf32> to vector<8x8xf32>
    %21 = vector.shape_cast %18 : vector<8x8xf32> to vector<1x1x8x8xf32>
    tpu.vector_store %arg7[%c0_22, %c0_23, %c0_24, %c0_25], %21 {strides = array<i32>} : memref<1x1x8x8xf32, #tpu.memory_space<vmem>>, vector<1x1x8x8xf32>,
    %c2 = arith.constant 2 : index
    %c0_26 = arith.constant 0 : index
    %c0_27 = arith.constant 0 : index
    %c0_28 = arith.constant 0 : index
    %22 = vector.load %arg4[%c2, %c0_26, %c0_27, %c0_28] : memref<3x1x32x8xf32, #tpu.memory_space<vmem>>, vector<1x1x32x8xf32>
    %23 = vector.shape_cast %22 : vector<1x1x32x8xf32> to vector<32x8xf32>
    %cst_29 = arith.constant dense<0.000000e+00> : vector<8x8xf32>
    %24 = tpu.matmul %1, %23, %cst_29 {dimension_numbers = #tpu.dot_dimension_numbers<[1], [0], [0], [1], [0, 0, 1, 1], [], []>} : vector<8x32xf32>, vector<32x8xf32>, vector<8x8xf32> -> vector<8x8xf32>
    %c2_30 = arith.constant 2 : index
    %c0_31 = arith.constant 0 : index
    %c0_32 = arith.constant 0 : index
    %c0_33 = arith.constant 0 : index
    %25 = vector.load %arg5[%c2_30, %c0_31, %c0_32, %c0_33] : memref<3x1x1x8xf32, #tpu.memory_space<vmem>>, vector<1x1x1x8xf32>
    %26 = vector.shape_cast %25 : vector<1x1x1x8xf32> to vector<1x8xf32>
    %27 = vector.broadcast %26 : vector<1x8xf32> to vector<8x8xf32>
    %28 = arith.addf %24, %27 : vector<8x8xf32>
    %c0_34 = arith.constant 0 : index
    %c0_35 = arith.constant 0 : index
    %c0_36 = arith.constant 0 : index
    %c0_37 = arith.constant 0 : index
    %29 = vector.load %arg8[%c0_34, %c0_35, %c0_36, %c0_37] : memref<1x1x8x8xf32, #tpu.memory_space<vmem>>, vector<1x1x8x8xf32>
    %30 = vector.shape_cast %29 : vector<1x1x8x8xf32> to vector<8x8xf32>
    %31 = vector.shape_cast %28 : vector<8x8xf32> to vector<1x1x8x8xf32>
    tpu.vector_store %arg8[%c0_34, %c0_35, %c0_36, %c0_37], %31 {strides = array<i32>} : memref<1x1x8x8xf32, #tpu.memory_space<vmem>>, vector<1x1x8x8xf32>,
    return
  }
  func.func @transform_0(%arg0: i32, %arg1: i32, %arg2: i32) -> (i32, i32, i32) {
    %c0_i32 = arith.constant 0 : i32
    %c0_i32_0 = arith.constant 0 : i32
    return %arg0, %arg1, %c0_i32 : i32, i32, i32
  }
  func.func @transform_1(%arg0: i32, %arg1: i32, %arg2: i32) -> (i32, i32, i32, i32) {
    %c0_i32 = arith.constant 0 : i32
    %c0_i32_0 = arith.constant 0 : i32
    %c0_i32_1 = arith.constant 0 : i32
    %c0_i32_2 = arith.constant 0 : i32
    return %c0_i32, %arg2, %c0_i32_0, %c0_i32_1 : i32, i32, i32, i32
  }
  func.func @transform_2(%arg0: i32, %arg1: i32, %arg2: i32) -> (i32, i32, i32, i32) {
    %c0_i32 = arith.constant 0 : i32
    %c0_i32_0 = arith.constant 0 : i32
    %c0_i32_1 = arith.constant 0 : i32
    %c0_i32_2 = arith.constant 0 : i32
    return %c0_i32, %arg2, %c0_i32_0, %c0_i32_1 : i32, i32, i32, i32
  }
  func.func @transform_3(%arg0: i32, %arg1: i32, %arg2: i32) -> (i32, i32, i32, i32) {
    %c0_i32 = arith.constant 0 : i32
    %c0_i32_0 = arith.constant 0 : i32
    return %arg0, %arg2, %arg1, %c0_i32 : i32, i32, i32, i32
  }
  func.func @transform_4(%arg0: i32, %arg1: i32, %arg2: i32) -> (i32, i32, i32, i32) {
    %c0_i32 = arith.constant 0 : i32
    %c0_i32_0 = arith.constant 0 : i32
    return %arg0, %arg2, %arg1, %c0_i32 : i32, i32, i32, i32
  }
  func.func @transform_5(%arg0: i32, %arg1: i32, %arg2: i32) -> (i32, i32, i32, i32) {
    %c0_i32 = arith.constant 0 : i32
    %c0_i32_0 = arith.constant 0 : i32
    return %arg0, %arg2, %arg1, %c0_i32 : i32, i32, i32, i32
  }
}

</mosaic_0001>

<llo_original>
// kernel: tpu_custom_call.1
$region0: #{tpu_custom_call.1}
  #allocation0 [shape = 'u32[]', space=smem, size = 0x4, offset = 0x4, fixed_abs, tag = 'smem constant byte address 0x4 - core index']
  #allocation1 [shape = 'u32[144,128]{1,0:T(1,128)}', space=vmem, size = 0x12000, scoped, tag = 'internal scratch']
  %s0 = inlined_call_operand.vmem [shape: f32[2,8,32], index: 0, kind: input, shape index: {}]
  %s1 = inlined_call_operand.vmem [shape: f32[3,4,32,8], index: 1, kind: input, shape index: {}]
  %s2 = inlined_call_operand.vmem [shape: f32[3,4,1,8], index: 2, kind: input, shape index: {}]
  %s3 = inlined_call_operand.hbm [shape: f32[2,4,8,8], index: 3, kind: output, shape index: {0}]
  %s4 = inlined_call_operand.hbm [shape: f32[2,4,8,8], index: 4, kind: output, shape index: {1}]
  %s5 = inlined_call_operand.hbm [shape: f32[2,4,8,8], index: 5, kind: output, shape index: {2}]
  %6 = xla_tuple %s3, %s4, %s5
  %s7 = sld [smem:[#allocation0]]
  $region133: #{tpu_custom_call.1} parent=0
    _
  %s9 = ssub.s32 1, %s7
  %s10 = scalar_select 0, %s9, %s7
  $region1: #{tpu_custom_call.1} parent=0
    #allocation2 [shape = 'u8[98304]{0}', space=vmem, size = 0x18000, scoped, tag = 'input window, operand 1']
    #allocation3 [shape = 'u8[3072]{0}', space=vmem, size = 0xc00, scoped, tag = 'input window, operand 2']
    #allocation4 [shape = 'u8[8192]{0}', space=vmem, size = 0x2000, scoped, tag = 'output window, operand 0']
    #allocation5 [shape = 's32[2]{0}', space=sflag, size = 0x8, scoped, tag = 'scoped memory for tpu_custom_call.1']
    #allocation6 [shape = 'u8[8192]{0}', space=vmem, size = 0x2000, scoped, tag = 'output window, operand 1']
    #allocation7 [shape = 's32[2]{0}', space=sflag, size = 0x8, scoped, tag = 'scoped memory for tpu_custom_call.1']
    #allocation8 [shape = 'u8[8192]{0}', space=vmem, size = 0x2000, scoped, tag = 'output window, operand 2']
    %11 = vsyncpa [#allocation5], 0
    %s12 = scalar_lea.sflag [#allocation5], 1
    %13 = vsyncpa %s12, 0
    %14 = vsyncpa [#allocation7], 0
    %s15 = scalar_lea.sflag [#allocation7], 1
    %16 = vsyncpa %s15, 0
    loop: start=0, step=1, limit=10
    $region2: #{tpu_custom_call.1} parent=1 // loop_pre_header
      _
    $region3: #{tpu_custom_call.1} parent=1 // loop_header
      %s18 = sphi 0, %s22
      %p19 = scmp.ge.s32.totalorder %s18, 10
      %s25 = sphi 0, %s44
      %s26 = sphi 0, %s40
      %s27 = sphi 0, %s36
      %s28 = sphi 0, %s25
      %s29 = sphi 0, %s26
      %s30 = sphi 0, %s27
      %s31 = sphi 0, %s28
      %s32 = sphi 0, %s29
      %s33 = sphi 0, %s30
      %s49 = sphi 0, %s51
      %s52 = sphi 0, %s49
      %s53 = sphi 0, %s52
      %s69 = sphi 0, %s53
      %s75 = sphi 0, %s77
      %s78 = sphi 0, %s75
      %s79 = sphi 0, %s78
      %s95 = sphi 0, %s79
      %s101 = sphi 0, %s103
      %s104 = sphi 0, %s101
      %s105 = sphi 0, %s104
      %s121 = sphi 0, %s105
      %s131 = sphi 0, %s133
      %s134 = sphi 0, %s131
      %s135 = sphi 0, %s134
      %s151 = sphi 0, %s135
      %s161 = sphi 0, %s163
      %s164 = sphi 0, %s161
      %s165 = sphi 0, %s164
      %s181 = sphi 0, %s165
      %s191 = sphi 0, %s193
      %s194 = sphi 0, %s191
      %s195 = sphi 0, %s194
      %s211 = sphi 0, %s195
    $region4: #{tpu_custom_call.1} parent=1 // loop_header_branch
      %21 = sbr.rel (%p19) target = $region8
    $region5: #{tpu_custom_call.1} parent=1 // loop_body
      %s23 = ssub.s32 %s18, 1
      %s24 = ssub.s32 %s18, 2
      %s34 = sadd.s32 1, %s27
      %p35 = scmp.ge.s32.totalorder %s34, 4
      %s36 = scalar_select %p35, 0, %s34
      %s37 = sadd.s32 1, %s26
      %s38 = scalar_select %p35, %s37, %s26
      %p39 = scmp.ge.s32.totalorder %s38, 1
      %s40 = scalar_select %p39, 0, %s38
      %s41 = sadd.s32 1, %s25
      %s42 = scalar_select %p39, %s41, %s25
      %p43 = scmp.ge.s32.totalorder %s42, 2
      %s44 = scalar_select %p43, 0, %s42
      %s45 = ssub.s32 %s25, %s44
      %s46 = ssub.s32 %s26, %s40
      %s47 = sor.u32 %s45, %s46
      %p48 = scmp.eq.s32.totalorder %s47, 0
      %s50 = sadd.s32 %s49, 1
      %s51 = scalar_select %p48, %s49, %s50
      %p54 = pneg %p48
      %p55 = scmp.eq.s32.totalorder %s18, 7
      %p56 = por %p54, %p55
      %p57 = scmp.ne.s32.totalorder %s49, %s52
      %p58 = scmp.eq.s32.totalorder %s18, 0
      %p59 = por %p57, %p58
      %p60 = scmp.ne.s32.totalorder %s49, %s52
      %p61 = scmp.eq.s32.totalorder %s23, 7
      %p62 = por %p60, %p61
      %p63 = scmp.ne.s32.totalorder %s52, %s53
      %p64 = scmp.eq.s32.totalorder %s23, 0
      %p65 = por %p63, %p64
      %p66 = scmp.ne.s32.totalorder %s52, %s53
      %p67 = scmp.eq.s32.totalorder %s24, 7
      %p68 = por %p66, %p67
      %p70 = scmp.ne.s32.totalorder %s53, %s69
      %p71 = scmp.eq.s32.totalorder %s24, 0
      %p72 = por %p70, %p71
      %s73 = ssub.s32 %s27, %s36
      %p74 = scmp.eq.s32.totalorder %s73, 0
      %s76 = sadd.s32 %s75, 1
      %s77 = scalar_select %p74, %s75, %s76
      %p80 = pneg %p74
      %p81 = scmp.eq.s32.totalorder %s18, 7
      %p82 = por %p80, %p81
      %p83 = scmp.ne.s32.totalorder %s75, %s78
      %p84 = scmp.eq.s32.totalorder %s18, 0
      %p85 = por %p83, %p84
      %p86 = scmp.ne.s32.totalorder %s75, %s78
      %p87 = scmp.eq.s32.totalorder %s23, 7
      %p88 = por %p86, %p87
      %p89 = scmp.ne.s32.totalorder %s78, %s79
      %p90 = scmp.eq.s32.totalorder %s23, 0
      %p91 = por %p89, %p90
      %p92 = scmp.ne.s32.totalorder %s78, %s79
      %p93 = scmp.eq.s32.totalorder %s24, 7
      %p94 = por %p92, %p93
      %p96 = scmp.ne.s32.totalorder %s79, %s95
      %p97 = scmp.eq.s32.totalorder %s24, 0
      %p98 = por %p96, %p97
      %s99 = ssub.s32 %s27, %s36
      %p100 = scmp.eq.s32.totalorder %s99, 0
      %s102 = sadd.s32 %s101, 1
      %s103 = scalar_select %p100, %s101, %s102
      %p106 = pneg %p100
      %p107 = scmp.eq.s32.totalorder %s18, 7
      %p108 = por %p106, %p107
      %p109 = scmp.ne.s32.totalorder %s101, %s104
      %p110 = scmp.eq.s32.totalorder %s18, 0
      %p111 = por %p109, %p110
      %p112 = scmp.ne.s32.totalorder %s101, %s104
      %p113 = scmp.eq.s32.totalorder %s23, 7
      %p114 = por %p112, %p113
      %p115 = scmp.ne.s32.totalorder %s104, %s105
      %p116 = scmp.eq.s32.totalorder %s23, 0
      %p117 = por %p115, %p116
      %p118 = scmp.ne.s32.totalorder %s104, %s105
      %p119 = scmp.eq.s32.totalorder %s24, 7
      %p120 = por %p118, %p119
      %p122 = scmp.ne.s32.totalorder %s105, %s121
      %p123 = scmp.eq.s32.totalorder %s24, 0
      %p124 = por %p122, %p123
      %s125 = ssub.s32 %s25, %s44
      %s126 = ssub.s32 %s27, %s36
      %s127 = sor.u32 %s125, %s126
      %s128 = ssub.s32 %s26, %s40
      %s129 = sor.u32 %s127, %s128
      %p130 = scmp.eq.s32.totalorder %s129, 0
      %s132 = sadd.s32 %s131, 1
      %s133 = scalar_select %p130, %s131, %s132
      %p136 = pneg %p130
      %p137 = scmp.eq.s32.totalorder %s18, 7
      %p138 = por %p136, %p137
      %p139 = scmp.ne.s32.totalorder %s131, %s134
      %p140 = scmp.eq.s32.totalorder %s18, 0
      %p141 = por %p139, %p140
      %p142 = scmp.ne.s32.totalorder %s131, %s134
      %p143 = scmp.eq.s32.totalorder %s23, 7
      %p144 = por %p142, %p143
      %p145 = scmp.ne.s32.totalorder %s134, %s135
      %p146 = scmp.eq.s32.totalorder %s23, 0
      %p147 = por %p145, %p146
      %p148 = scmp.ne.s32.totalorder %s134, %s135
      %p149 = scmp.eq.s32.totalorder %s24, 7
      %p150 = por %p148, %p149
      %p152 = scmp.ne.s32.totalorder %s135, %s151
      %p153 = scmp.eq.s32.totalorder %s24, 0
      %p154 = por %p152, %p153
      %s155 = ssub.s32 %s25, %s44
      %s156 = ssub.s32 %s27, %s36
      %s157 = sor.u32 %s155, %s156
      %s158 = ssub.s32 %s26, %s40
      %s159 = sor.u32 %s157, %s158
      %p160 = scmp.eq.s32.totalorder %s159, 0
      %s162 = sadd.s32 %s161, 1
      %s163 = scalar_select %p160, %s161, %s162
      %p166 = pneg %p160
      %p167 = scmp.eq.s32.totalorder %s18, 7
      %p168 = por %p166, %p167
      %p169 = scmp.ne.s32.totalorder %s161, %s164
      %p170 = scmp.eq.s32.totalorder %s18, 0
      %p171 = por %p169, %p170
      %p172 = scmp.ne.s32.totalorder %s161, %s164
      %p173 = scmp.eq.s32.totalorder %s23, 7
      %p174 = por %p172, %p173
      %p175 = scmp.ne.s32.totalorder %s164, %s165
      %p176 = scmp.eq.s32.totalorder %s23, 0
      %p177 = por %p175, %p176
      %p178 = scmp.ne.s32.totalorder %s164, %s165
      %p179 = scmp.eq.s32.totalorder %s24, 7
      %p180 = por %p178, %p179
      %p182 = scmp.ne.s32.totalorder %s165, %s181
      %p183 = scmp.eq.s32.totalorder %s24, 0
      %p184 = por %p182, %p183
      %s185 = ssub.s32 %s25, %s44
      %s186 = ssub.s32 %s27, %s36
      %s187 = sor.u32 %s185, %s186
      %s188 = ssub.s32 %s26, %s40
      %s189 = sor.u32 %s187, %s188
      %p190 = scmp.eq.s32.totalorder %s189, 0
      %s192 = sadd.s32 %s191, 1
      %s193 = scalar_select %p190, %s191, %s192
      %p196 = pneg %p190
      %p197 = scmp.eq.s32.totalorder %s18, 7
      %p198 = por %p196, %p197
      %p199 = scmp.ne.s32.totalorder %s191, %s194
      %p200 = scmp.eq.s32.totalorder %s18, 0
      %p201 = por %p199, %p200
      %p202 = scmp.ne.s32.totalorder %s191, %s194
      %p203 = scmp.eq.s32.totalorder %s23, 7
      %p204 = por %p202, %p203
      %p205 = scmp.ne.s32.totalorder %s194, %s195
      %p206 = scmp.eq.s32.totalorder %s23, 0
      %p207 = por %p205, %p206
      %p208 = scmp.ne.s32.totalorder %s194, %s195
      %p209 = scmp.eq.s32.totalorder %s24, 7
      %p210 = por %p208, %p209
      %p212 = scmp.ne.s32.totalorder %s195, %s211
      %p213 = scmp.eq.s32.totalorder %s24, 0
      %p214 = por %p212, %p213
      %p215 = scmp.le.s32.totalorder 1, %s18
      %p216 = scmp.lt.s32.totalorder %s18, 9
      %p217 = pnand %p215, %p216
      %p218 = pneg %p217
      // Predicated region
      $region9: #{tpu_custom_call.1} parent=5 // pred_check
        _
      $region10: #{tpu_custom_call.1} parent=5 // pred_check_branch
        %220 = sbr.rel (%p217) target = $region12
      $region11: #{tpu_custom_call.1} parent=5 // pred_region
        %s221 = ssub.s32 %s18, 1
      $region12: #{tpu_custom_call.1} parent=5 // pred_fallthru
        _
      %p222 = scmp.lt.s32.totalorder %s18, 8
      // Predicated region
      $region13: #{tpu_custom_call.1} parent=5 // pred_check
        %p223 = pneg %p222
      $region14: #{tpu_custom_call.1} parent=5 // pred_check_branch
        %225 = sbr.rel (%p223) target = $region16
      $region15: #{tpu_custom_call.1} parent=5 // pred_region
        // Predicated region
        $region17: #{tpu_custom_call.1} parent=15 // pred_check
          %p226 = pneg %p59
        $region18: #{tpu_custom_call.1} parent=15 // pred_check_branch
          %228 = sbr.rel (%p226) target = $region20
        $region19: #{tpu_custom_call.1} parent=15 // pred_region
          %p229 = scmp.lt.s32.totalorder %s25, 1
          %s230 = scalar_select %p229, %s25, 1
          %p231 = scmp.lt.s32.totalorder %s26, 0
          %s232 = scalar_select %p231, %s26, 0
          %s233 = sadd.s32 %s232, %s230
          %s234 = smul.addr %s233, 8
          %s235 = scalar_lea.vmem %s0, %s234
        $region20: #{tpu_custom_call.1} parent=15 // pred_fallthru
          _
        // Predicated region
        $region21: #{tpu_custom_call.1} parent=15 // pred_check
          %p236 = pneg %p85
        $region22: #{tpu_custom_call.1} parent=15 // pred_check_branch
          %238 = sbr.rel (%p236) target = $region24
        $region23: #{tpu_custom_call.1} parent=15 // pred_region
          %s239 = sand.u32 %s75, 1
          %s240 = sand.u32 %s75, 1
          %s241 = smul.addr %s240, 96
          %s242 = scalar_lea.vmem [#allocation2], %s241
          %s243 = smul.addr %s27, 4
          %s244 = smul.addr %s243, 8
          %s245 = scalar_lea.vmem %s1, %s244
          // Predicated region
          $region25: #{tpu_custom_call.1} parent=23 // pred_check
            _
          $region26: #{tpu_custom_call.1} parent=23 // pred_check_branch
            %247 = sbr.rel (0) target = $region28
          $region27: #{tpu_custom_call.1} parent=23 // pred_region
            // Predicated region
            $region29: #{tpu_custom_call.1} parent=27 // pred_check
              _
            $region30: #{tpu_custom_call.1} parent=27 // pred_check_branch
              %249 = sbr.rel (0) target = $region32
            $region31: #{tpu_custom_call.1} parent=27 // pred_region
              // Predicated region
              $region44: #{tpu_custom_call.1} parent=31 // pred_check
                _
              $region45: #{tpu_custom_call.1} parent=31 // pred_check_branch
                %287 = sbr.rel (0) target = $region47
              $region46: #{tpu_custom_call.1} parent=31 // pred_region
                loop: start=0, step=1, limit=1
                $region48: #{tpu_custom_call.1} parent=46 // loop_pre_header
                  _
                $region49: #{tpu_custom_call.1} parent=46 // loop_header
                  %s289 = sphi 0, %s293
                  %p290 = scmp.ge.s32.totalorder %s289, 1
                  %s294 = sphi %s245, %s245
                  %s295 = sphi %s242, %s242
                $region50: #{tpu_custom_call.1} parent=46 // loop_header_branch
                  %292 = sbr.rel (%p290) target = $region54
                $region51: #{tpu_custom_call.1} parent=46 // loop_body
                  %v296 = vld [vmem:[%s294] sm:$0xff]
                  %297 = vst [vmem:[%s295] sm:$0xff] %v296
                  %v298 = vld [vmem:[%s294 + $0x8] sm:$0xff]
                  %299 = vst [vmem:[%s295 + $0x8] sm:$0xff] %v298
                  %v300 = vld [vmem:[%s294 + $0x10] sm:$0xff]
                  %301 = vst [vmem:[%s295 + $0x10] sm:$0xff] %v300
                  %v302 = vld [vmem:[%s294 + $0x18] sm:$0xff]
                  %303 = vst [vmem:[%s295 + $0x18] sm:$0xff] %v302
                  %v304 = vld [vmem:[%s294 + $0x80] sm:$0xff]
                  %305 = vst [vmem:[%s295 + $0x20] sm:$0xff] %v304
                  %v306 = vld [vmem:[%s294 + $0x88] sm:$0xff]
                  %307 = vst [vmem:[%s295 + $0x28] sm:$0xff] %v306
                  %v308 = vld [vmem:[%s294 + $0x90] sm:$0xff]
                  %309 = vst [vmem:[%s295 + $0x30] sm:$0xff] %v308
                  %v310 = vld [vmem:[%s294 + $0x98] sm:$0xff]
                  %311 = vst [vmem:[%s295 + $0x38] sm:$0xff] %v310
                  %v312 = vld [vmem:[%s294 + $0x100] sm:$0xff]
                  %313 = vst [vmem:[%s295 + $0x40] sm:$0xff] %v312
                  %v314 = vld [vmem:[%s294 + $0x108] sm:$0xff]
                  %315 = vst [vmem:[%s295 + $0x48] sm:$0xff] %v314
                  %v316 = vld [vmem:[%s294 + $0x110] sm:$0xff]
                  %317 = vst [vmem:[%s295 + $0x50] sm:$0xff] %v316
                  %v318 = vld [vmem:[%s294 + $0x118] sm:$0xff]
                  %319 = vst [vmem:[%s295 + $0x58] sm:$0xff] %v318
                $region52: #{tpu_custom_call.1} parent=46 // loop_footer
                  %s293 = sadd.s32 1, %s289
                $region53: #{tpu_custom_call.1} parent=46 // loop_footer_branch
                  %288 = sbr.rel target = $region49
                $region54: #{tpu_custom_call.1} parent=46 // loop_exit
                  _
              $region47: #{tpu_custom_call.1} parent=31 // pred_fallthru
                _
              // Predicated region
              $region55: #{tpu_custom_call.1} parent=31 // pred_check
                _
              $region56: #{tpu_custom_call.1} parent=31 // pred_check_branch
                %321 = sbr.rel target = $region58
              $region57: #{tpu_custom_call.1} parent=31 // pred_region
                _
              $region58: #{tpu_custom_call.1} parent=31 // pred_fallthru
                _
            $region32: #{tpu_custom_call.1} parent=27 // pred_fallthru
              _
            // Predicated region
            $region33: #{tpu_custom_call.1} parent=27 // pred_check
              _
            $region34: #{tpu_custom_call.1} parent=27 // pred_check_branch
              %251 = sbr.rel target = $region36
            $region35: #{tpu_custom_call.1} parent=27 // pred_region
              %s253 = ssub.s32 256, 1
              loop: start=0, step=1, limit=1
              $region37: #{tpu_custom_call.1} parent=35 // loop_pre_header
                _
              $region38: #{tpu_custom_call.1} parent=35 // loop_header
                %s255 = sphi 0, %s259
                %p256 = scmp.ge.s32.totalorder %s255, 1
                %s260 = sphi %s245, %s245
                %s261 = sphi %s242, %s242
              $region39: #{tpu_custom_call.1} parent=35 // loop_header_branch
                %258 = sbr.rel (%p256) target = $region43
              $region40: #{tpu_custom_call.1} parent=35 // loop_body
                %v262 = vld [vmem:[%s260] sm:%s253]
                %263 = vst [vmem:[%s261] sm:%s253] %v262
                %v264 = vld [vmem:[%s260 + $0x8] sm:%s253]
                %265 = vst [vmem:[%s261 + $0x8] sm:%s253] %v264
                %v266 = vld [vmem:[%s260 + $0x10] sm:%s253]
                %267 = vst [vmem:[%s261 + $0x10] sm:%s253] %v266
                %v268 = vld [vmem:[%s260 + $0x18] sm:%s253]
                %269 = vst [vmem:[%s261 + $0x18] sm:%s253] %v268
                %v270 = vld [vmem:[%s260 + $0x80] sm:%s253]
                %271 = vst [vmem:[%s261 + $0x20] sm:%s253] %v270
                %v272 = vld [vmem:[%s260 + $0x88] sm:%s253]
                %273 = vst [vmem:[%s261 + $0x28] sm:%s253] %v272
                %v274 = vld [vmem:[%s260 + $0x90] sm:%s253]
                %275 = vst [vmem:[%s261 + $0x30] sm:%s253] %v274
                %v276 = vld [vmem:[%s260 + $0x98] sm:%s253]
                %277 = vst [vmem:[%s261 + $0x38] sm:%s253] %v276
                %v278 = vld [vmem:[%s260 + $0x100] sm:%s253]
                %279 = vst [vmem:[%s261 + $0x40] sm:%s253] %v278
                %v280 = vld [vmem:[%s260 + $0x108] sm:%s253]
                %281 = vst [vmem:[%s261 + $0x48] sm:%s253] %v280
                %v282 = vld [vmem:[%s260 + $0x110] sm:%s253]
                %283 = vst [vmem:[%s261 + $0x50] sm:%s253] %v282
                %v284 = vld [vmem:[%s260 + $0x118] sm:%s253]
                %285 = vst [vmem:[%s261 + $0x58] sm:%s253] %v284
              $region41: #{tpu_custom_call.1} parent=35 // loop_footer
                %s259 = sadd.s32 1, %s255
              $region42: #{tpu_custom_call.1} parent=35 // loop_footer_branch
                %254 = sbr.rel target = $region38
              $region43: #{tpu_custom_call.1} parent=35 // loop_exit
                _
            $region36: #{tpu_custom_call.1} parent=27 // pred_fallthru
              _
          $region28: #{tpu_custom_call.1} parent=23 // pred_fallthru
            _
          %322 = vnop
        $region24: #{tpu_custom_call.1} parent=15 // pred_fallthru
          _
        // Predicated region
        $region59: #{tpu_custom_call.1} parent=15 // pred_check
          %p323 = pneg %p111
        $region60: #{tpu_custom_call.1} parent=15 // pred_check_branch
          %325 = sbr.rel (%p323) target = $region62
        $region61: #{tpu_custom_call.1} parent=15 // pred_region
          %s326 = sand.u32 %s101, 1
          %s327 = sand.u32 %s101, 1
          %s328 = smul.addr %s327, 3
          %s329 = scalar_lea.vmem [#allocation3], %s328
          %s330 = scalar_lea.vmem %s2, %s27
          // Predicated region
          $region63: #{tpu_custom_call.1} parent=61 // pred_check
            _
          $region64: #{tpu_custom_call.1} parent=61 // pred_check_branch
            %332 = sbr.rel (0) target = $region66
          $region65: #{tpu_custom_call.1} parent=61 // pred_region
            // Predicated region
            $region67: #{tpu_custom_call.1} parent=65 // pred_check
              _
            $region68: #{tpu_custom_call.1} parent=65 // pred_check_branch
              %334 = sbr.rel target = $region70
            $region69: #{tpu_custom_call.1} parent=65 // pred_region
              // Predicated region
              $region82: #{tpu_custom_call.1} parent=69 // pred_check
                _
              $region83: #{tpu_custom_call.1} parent=69 // pred_check_branch
                %354 = sbr.rel (0) target = $region85
              $region84: #{tpu_custom_call.1} parent=69 // pred_region
                %s356 = ssub.s32 2, 1
                loop: start=0, step=1, limit=1
                $region86: #{tpu_custom_call.1} parent=84 // loop_pre_header
                  _
                $region87: #{tpu_custom_call.1} parent=84 // loop_header
                  %s358 = sphi 0, %s362
                  %p359 = scmp.ge.s32.totalorder %s358, 1
                  %s363 = sphi %s330, %s330
                  %s364 = sphi %s329, %s329
                $region88: #{tpu_custom_call.1} parent=84 // loop_header_branch
                  %361 = sbr.rel (%p359) target = $region92
                $region89: #{tpu_custom_call.1} parent=84 // loop_body
                  %v365 = vld [vmem:[%s363] sm:%s356]
                  %366 = vst [vmem:[%s364] sm:%s356] %v365
                  %v367 = vld [vmem:[%s363 + $0x4] sm:%s356]
                  %368 = vst [vmem:[%s364 + $0x1] sm:%s356] %v367
                  %v369 = vld [vmem:[%s363 + $0x8] sm:%s356]
                  %370 = vst [vmem:[%s364 + $0x2] sm:%s356] %v369
                $region90: #{tpu_custom_call.1} parent=84 // loop_footer
                  %s362 = sadd.s32 1, %s358
                $region91: #{tpu_custom_call.1} parent=84 // loop_footer_branch
                  %357 = sbr.rel target = $region87
                $region92: #{tpu_custom_call.1} parent=84 // loop_exit
                  _
              $region85: #{tpu_custom_call.1} parent=69 // pred_fallthru
                _
            $region70: #{tpu_custom_call.1} parent=65 // pred_fallthru
              _
            // Predicated region
            $region71: #{tpu_custom_call.1} parent=65 // pred_check
              _
            $region72: #{tpu_custom_call.1} parent=65 // pred_check_branch
              %336 = sbr.rel (0) target = $region74
            $region73: #{tpu_custom_call.1} parent=65 // pred_region
              %s338 = ssub.s32 2, 1
              loop: start=0, step=1, limit=1
              $region75: #{tpu_custom_call.1} parent=73 // loop_pre_header
                _
              $region76: #{tpu_custom_call.1} parent=73 // loop_header
                %s340 = sphi 0, %s344
                %p341 = scmp.ge.s32.totalorder %s340, 1
                %s345 = sphi %s330, %s330
                %s346 = sphi %s329, %s329
              $region77: #{tpu_custom_call.1} parent=73 // loop_header_branch
                %343 = sbr.rel (%p341) target = $region81
              $region78: #{tpu_custom_call.1} parent=73 // loop_body
                %v347 = vld [vmem:[%s345] sm:%s338]
                %348 = vst [vmem:[%s346] sm:%s338] %v347
                %v349 = vld [vmem:[%s345 + $0x4] sm:%s338]
                %350 = vst [vmem:[%s346 + $0x1] sm:%s338] %v349
                %v351 = vld [vmem:[%s345 + $0x8] sm:%s338]
                %352 = vst [vmem:[%s346 + $0x2] sm:%s338] %v351
              $region79: #{tpu_custom_call.1} parent=73 // loop_footer
                %s344 = sadd.s32 1, %s340
              $region80: #{tpu_custom_call.1} parent=73 // loop_footer_branch
                %339 = sbr.rel target = $region76
              $region81: #{tpu_custom_call.1} parent=73 // loop_exit
                _
            $region74: #{tpu_custom_call.1} parent=65 // pred_fallthru
              _
          $region66: #{tpu_custom_call.1} parent=61 // pred_fallthru
            _
          %371 = vnop
        $region62: #{tpu_custom_call.1} parent=15 // pred_fallthru
          _
      $region16: #{tpu_custom_call.1} parent=5 // pred_fallthru
        _
      %p372 = scmp.le.s32.totalorder 1, %s18
      %p373 = scmp.lt.s32.totalorder %s18, 9
      %p374 = pnand %p372, %p373
      %p375 = pneg %p374
      // Predicated region
      $region93: #{tpu_custom_call.1} parent=5 // pred_check
        _
      $region94: #{tpu_custom_call.1} parent=5 // pred_check_branch
        %377 = sbr.rel (%p374) target = $region96
      $region95: #{tpu_custom_call.1} parent=5 // pred_region
        %s378 = ssub.s32 %s18, 1
        %s379 = sand.u32 %s78, 1
        %s380 = sand.u32 %s78, 1
        %s381 = smul.addr %s380, 96
        %s382 = scalar_lea.vmem [#allocation2], %s381
        // Predicated region
        $region97: #{tpu_custom_call.1} parent=95 // pred_check
          %p383 = pneg %p91
        $region98: #{tpu_custom_call.1} parent=95 // pred_check_branch
          %385 = sbr.rel (%p383) target = $region100
        $region99: #{tpu_custom_call.1} parent=95 // pred_region
          _
        $region100: #{tpu_custom_call.1} parent=95 // pred_fallthru
          _
        %s386 = sand.u32 %s104, 1
        %s387 = sand.u32 %s104, 1
        %s388 = smul.addr %s387, 3
        %s389 = scalar_lea.vmem [#allocation3], %s388
        // Predicated region
        $region101: #{tpu_custom_call.1} parent=95 // pred_check
          %p390 = pneg %p117
        $region102: #{tpu_custom_call.1} parent=95 // pred_check_branch
          %392 = sbr.rel (%p390) target = $region104
        $region103: #{tpu_custom_call.1} parent=95 // pred_region
          _
        $region104: #{tpu_custom_call.1} parent=95 // pred_fallthru
          _
        %p393 = scmp.lt.s32.totalorder %s28, 1
        %s394 = scalar_select %p393, %s28, 1
        %p395 = scmp.lt.s32.totalorder %s29, 0
        %s396 = scalar_select %p395, %s29, 0
        %s397 = sadd.s32 %s396, %s394
        %s398 = smul.addr %s397, 8
        %s399 = scalar_lea.vmem %s0, %s398
        %p400 = pneg %p65
        %p401 = pneg %p62
        %s402 = sand.u32 %s78, 1
        %s403 = sand.u32 %s78, 1
        %s404 = smul.addr %s403, 96
        %s405 = scalar_lea.vmem [#allocation2], %s404
        %p406 = pneg %p91
        %p407 = pneg %p88
        %s408 = sand.u32 %s104, 1
        %s409 = sand.u32 %s104, 1
        %s410 = smul.addr %s409, 3
        %s411 = scalar_lea.vmem [#allocation3], %s410
        %p412 = pneg %p117
        %p413 = pneg %p114
        %p414 = pneg %p147
        %p415 = pneg %p144
        %s416 = sand.u32 %s134, 1
        %s417 = scalar_lea.sflag [#allocation5], %s416
        %s418 = sand.u32 %s134, 1
        %s419 = smul.addr %s418, 8
        %s420 = scalar_lea.vmem [#allocation4], %s419
        %p421 = pneg %p177
        %p422 = pneg %p174
        %s423 = sand.u32 %s23, 1
        %s424 = scalar_lea.sflag [#allocation7], %s423
        %s425 = sand.u32 %s164, 1
        %s426 = smul.addr %s425, 8
        %s427 = scalar_lea.vmem [#allocation6], %s426
        %p428 = pneg %p207
        %p429 = pneg %p204
        %s430 = sand.u32 %s23, 1
        %s431 = scalar_lea.sflag [#allocation7], %s430
        %s432 = sand.u32 %s194, 1
        %s433 = smul.addr %s432, 8
        %s434 = scalar_lea.vmem [#allocation8], %s433
        %p435 = scmp.lt.s32.totalorder %s28, 1
        %s436 = scalar_select %p435, %s28, 1
        %p437 = scmp.lt.s32.totalorder %s29, 0
        %s438 = scalar_select %p437, %s29, 0
        %s439 = sadd.s32 %s438, %s436
        %s440 = smul.addr %s439, 8
        %s441 = scalar_lea.vmem %s0, %s440
        %v442 = vld [vmem:[%s441] sm:$0xff]
        %v443 = vld [vmem:[%s382] sm:$0xff]
        %v444 = vld [vmem:[%s382 + $0x8] sm:$0xff]
        %v445 = vld [vmem:[%s382 + $0x10] sm:$0xff]
        %v446 = vld [vmem:[%s382 + $0x18] sm:$0xff]
        %v447 = vld [vmem:[%s389] sm:$0x1]
        %v449 = vlaneseq
        %v450 = vshrl.u32 %v449, 7
        %v451 = vsub.s32 0, %v450
        %v452 = vrot.slane %v447, %v451
        %vm454 = vcmask 261120
        %v456 = vsel %vm454, %v442, 0
        %458 = vmatprep.subr.mxu0 0.0
        %459 = vmatpush1.msra.mxu0 0.0
        %460 = vmatprep.subr.mxu0 0.0
        %461 = vmatpush1.msra.mxu0 0.0
        %462 = vmatprep.subr.mxu0 0.0
        %463 = vmatpush1.msra.mxu0 0.0
        %464 = vmatprep.subr.mxu0 0.0
        %465 = vmatpush1.msra.mxu0 0.0
        %466 = vmatprep.subr.mxu0 0.0
        %467 = vmatpush1.msra.mxu0 0.0
        %468 = vmatprep.subr.mxu0 0.0
        %469 = vmatpush1.msra.mxu0 0.0
        %470 = vmatprep.subr.mxu0 0.0
        %471 = vmatpush1.msra.mxu0 0.0
        %472 = vmatprep.subr.mxu0 0.0
        %473 = vmatpush1.msra.mxu0 0.0
        %474 = vmatprep.subr.mxu0 0.0
        %475 = vmatpush1.msra.mxu0 0.0
        %476 = vmatprep.subr.mxu0 0.0
        %477 = vmatpush1.msra.mxu0 0.0
        %478 = vmatprep.subr.mxu0 0.0
        %479 = vmatpush1.msra.mxu0 0.0
        %480 = vmatprep.subr.mxu0 0.0
        %481 = vmatpush1.msra.mxu0 0.0
        %482 = vmatprep.subr.mxu0 0.0
        %483 = vmatpush1.msra.mxu0 %v446
        %484 = vmatprep.subr.mxu0 0.0
        %485 = vmatpush1.msra.mxu0 %v445
        %486 = vmatprep.subr.mxu0 0.0
        %487 = vmatpush1.msra.mxu0 %v444
        %488 = vmatprep.subr.mxu0 0.0
        %489 = vmatpush1.msra.mxu0 %v443
        %490 = vmatprep.subr.mxu0 0.0
        %491 = vmatpush2.msra.mxu0 0.0
        %492 = vmatprep.subr.mxu0 0.0
        %493 = vmatpush2.msra.mxu0 0.0
        %494 = vmatprep.subr.mxu0 0.0
        %495 = vmatpush2.msra.mxu0 0.0
        %496 = vmatprep.subr.mxu0 0.0
        %497 = vmatpush2.msra.mxu0 0.0
        %498 = vmatprep.subr.mxu0 0.0
        %499 = vmatpush2.msra.mxu0 0.0
        %500 = vmatprep.subr.mxu0 0.0
        %501 = vmatpush2.msra.mxu0 0.0
        %502 = vmatprep.subr.mxu0 0.0
        %503 = vmatpush2.msra.mxu0 0.0
        %504 = vmatprep.subr.mxu0 0.0
        %505 = vmatpush2.msra.mxu0 0.0
        %506 = vmatprep.subr.mxu0 0.0
        %507 = vmatpush2.msra.mxu0 0.0
        %508 = vmatprep.subr.mxu0 0.0
        %509 = vmatpush2.msra.mxu0 0.0
        %510 = vmatprep.subr.mxu0 0.0
        %511 = vmatpush2.msra.mxu0 0.0
        %512 = vmatprep.subr.mxu0 0.0
        %513 = vmatpush2.msra.mxu0 0.0
        %514 = vmatprep.subr.mxu0 0.0
        %515 = vmatpush2.msra.mxu0 0.0
        %516 = vmatprep.subr.mxu0 0.0
        %517 = vmatpush2.msra.mxu0 0.0
        %518 = vmatprep.subr.mxu0 0.0
        %519 = vmatpush2.msra.mxu0 0.0
        %520 = vmatprep.subr.mxu0 0.0
        %521 = vmatpush2.msra.mxu0 0.0
        %522 = vmatprep.mubr.f32.mxu0 0.0
        %523 = vmatmul.mubr.f32.gmra.mxu0 %v456
        %v524 = vpop.f32.mrf.mxu0
        %v525 = vadd.f32 %v452, %v524
        %v526 = vpop.f32.mrf.mxu0
        %527 = vdwg.mxu0
        %vm528 = vcmask 64512
        %529 = vst.msk [vmem:[%s420] sm:$0xff] %vm528, %v525
        %s530 = scalar_lea.vmem %s382, 32 [#allocation2]
        %v531 = vld [vmem:[%s530] sm:$0xff]
        %v532 = vld [vmem:[%s530 + $0x8] sm:$0xff]
        %v533 = vld [vmem:[%s530 + $0x10] sm:$0xff]
        %v534 = vld [vmem:[%s530 + $0x18] sm:$0xff]
        %s535 = scalar_lea.vmem %s389, 1 [#allocation3]
        %v536 = vld [vmem:[%s535] sm:$0x1]
        %v538 = vlaneseq
        %v539 = vshrl.u32 %v538, 7
        %v540 = vsub.s32 0, %v539
        %v541 = vrot.slane %v536, %v540
        %543 = vmatprep.subr.mxu0 0.0
        %544 = vmatpush1.msra.mxu0 0.0
        %545 = vmatprep.subr.mxu0 0.0
        %546 = vmatpush1.msra.mxu0 0.0
        %547 = vmatprep.subr.mxu0 0.0
        %548 = vmatpush1.msra.mxu0 0.0
        %549 = vmatprep.subr.mxu0 0.0
        %550 = vmatpush1.msra.mxu0 0.0
        %551 = vmatprep.subr.mxu0 0.0
        %552 = vmatpush1.msra.mxu0 0.0
        %553 = vmatprep.subr.mxu0 0.0
        %554 = vmatpush1.msra.mxu0 0.0
        %555 = vmatprep.subr.mxu0 0.0
        %556 = vmatpush1.msra.mxu0 0.0
        %557 = vmatprep.subr.mxu0 0.0
        %558 = vmatpush1.msra.mxu0 0.0
        %559 = vmatprep.subr.mxu0 0.0
        %560 = vmatpush1.msra.mxu0 0.0
        %561 = vmatprep.subr.mxu0 0.0
        %562 = vmatpush1.msra.mxu0 0.0
        %563 = vmatprep.subr.mxu0 0.0
        %564 = vmatpush1.msra.mxu0 0.0
        %565 = vmatprep.subr.mxu0 0.0
        %566 = vmatpush1.msra.mxu0 0.0
        %567 = vmatprep.subr.mxu0 0.0
        %568 = vmatpush1.msra.mxu0 %v534
        %569 = vmatprep.subr.mxu0 0.0
        %570 = vmatpush1.msra.mxu0 %v533
        %571 = vmatprep.subr.mxu0 0.0
        %572 = vmatpush1.msra.mxu0 %v532
        %573 = vmatprep.subr.mxu0 0.0
        %574 = vmatpush1.msra.mxu0 %v531
        %575 = vmatprep.subr.mxu0 0.0
        %576 = vmatpush2.msra.mxu0 0.0
        %577 = vmatprep.subr.mxu0 0.0
        %578 = vmatpush2.msra.mxu0 0.0
        %579 = vmatprep.subr.mxu0 0.0
        %580 = vmatpush2.msra.mxu0 0.0
        %581 = vmatprep.subr.mxu0 0.0
        %582 = vmatpush2.msra.mxu0 0.0
        %583 = vmatprep.subr.mxu0 0.0
        %584 = vmatpush2.msra.mxu0 0.0
        %585 = vmatprep.subr.mxu0 0.0
        %586 = vmatpush2.msra.mxu0 0.0
        %587 = vmatprep.subr.mxu0 0.0
        %588 = vmatpush2.msra.mxu0 0.0
        %589 = vmatprep.subr.mxu0 0.0
        %590 = vmatpush2.msra.mxu0 0.0
        %591 = vmatprep.subr.mxu0 0.0
        %592 = vmatpush2.msra.mxu0 0.0
        %593 = vmatprep.subr.mxu0 0.0
        %594 = vmatpush2.msra.mxu0 0.0
        %595 = vmatprep.subr.mxu0 0.0
        %596 = vmatpush2.msra.mxu0 0.0
        %597 = vmatprep.subr.mxu0 0.0
        %598 = vmatpush2.msra.mxu0 0.0
        %599 = vmatprep.subr.mxu0 0.0
        %600 = vmatpush2.msra.mxu0 0.0
        %601 = vmatprep.subr.mxu0 0.0
        %602 = vmatpush2.msra.mxu0 0.0
        %603 = vmatprep.subr.mxu0 0.0
        %604 = vmatpush2.msra.mxu0 0.0
        %605 = vmatprep.subr.mxu0 0.0
        %606 = vmatpush2.msra.mxu0 0.0
        %607 = vmatprep.mubr.f32.mxu0 0.0
        %608 = vmatmul.mubr.f32.gmra.mxu0 %v456
        %v609 = vpop.f32.mrf.mxu0
        %v610 = vadd.f32 %v541, %v609
        %v611 = vpop.f32.mrf.mxu0
        %612 = vdwg.mxu0
        %613 = vst.msk [vmem:[%s427] sm:$0xff] %vm528, %v610
        %s614 = scalar_lea.vmem %s382, 64 [#allocation2]
        %v615 = vld [vmem:[%s614] sm:$0xff]
        %v616 = vld [vmem:[%s614 + $0x8] sm:$0xff]
        %v617 = vld [vmem:[%s614 + $0x10] sm:$0xff]
        %v618 = vld [vmem:[%s614 + $0x18] sm:$0xff]
        %s619 = scalar_lea.vmem %s389, 2 [#allocation3]
        %v620 = vld [vmem:[%s619] sm:$0x1]
        %v622 = vlaneseq
        %v623 = vshrl.u32 %v622, 7
        %v624 = vsub.s32 0, %v623
        %v625 = vrot.slane %v620, %v624
        %627 = vmatprep.subr.mxu0 0.0
        %628 = vmatpush1.msra.mxu0 0.0
        %629 = vmatprep.subr.mxu0 0.0
        %630 = vmatpush1.msra.mxu0 0.0
        %631 = vmatprep.subr.mxu0 0.0
        %632 = vmatpush1.msra.mxu0 0.0
        %633 = vmatprep.subr.mxu0 0.0
        %634 = vmatpush1.msra.mxu0 0.0
        %635 = vmatprep.subr.mxu0 0.0
        %636 = vmatpush1.msra.mxu0 0.0
        %637 = vmatprep.subr.mxu0 0.0
        %638 = vmatpush1.msra.mxu0 0.0
        %639 = vmatprep.subr.mxu0 0.0
        %640 = vmatpush1.msra.mxu0 0.0
        %641 = vmatprep.subr.mxu0 0.0
        %642 = vmatpush1.msra.mxu0 0.0
        %643 = vmatprep.subr.mxu0 0.0
        %644 = vmatpush1.msra.mxu0 0.0
        %645 = vmatprep.subr.mxu0 0.0
        %646 = vmatpush1.msra.mxu0 0.0
        %647 = vmatprep.subr.mxu0 0.0
        %648 = vmatpush1.msra.mxu0 0.0
        %649 = vmatprep.subr.mxu0 0.0
        %650 = vmatpush1.msra.mxu0 0.0
        %651 = vmatprep.subr.mxu0 0.0
        %652 = vmatpush1.msra.mxu0 %v618
        %653 = vmatprep.subr.mxu0 0.0
        %654 = vmatpush1.msra.mxu0 %v617
        %655 = vmatprep.subr.mxu0 0.0
        %656 = vmatpush1.msra.mxu0 %v616
        %657 = vmatprep.subr.mxu0 0.0
        %658 = vmatpush1.msra.mxu0 %v615
        %659 = vmatprep.subr.mxu0 0.0
        %660 = vmatpush2.msra.mxu0 0.0
        %661 = vmatprep.subr.mxu0 0.0
        %662 = vmatpush2.msra.mxu0 0.0
        %663 = vmatprep.subr.mxu0 0.0
        %664 = vmatpush2.msra.mxu0 0.0
        %665 = vmatprep.subr.mxu0 0.0
        %666 = vmatpush2.msra.mxu0 0.0
        %667 = vmatprep.subr.mxu0 0.0
        %668 = vmatpush2.msra.mxu0 0.0
        %669 = vmatprep.subr.mxu0 0.0
        %670 = vmatpush2.msra.mxu0 0.0
        %671 = vmatprep.subr.mxu0 0.0
        %672 = vmatpush2.msra.mxu0 0.0
        %673 = vmatprep.subr.mxu0 0.0
        %674 = vmatpush2.msra.mxu0 0.0
        %675 = vmatprep.subr.mxu0 0.0
        %676 = vmatpush2.msra.mxu0 0.0
        %677 = vmatprep.subr.mxu0 0.0
        %678 = vmatpush2.msra.mxu0 0.0
        %679 = vmatprep.subr.mxu0 0.0
        %680 = vmatpush2.msra.mxu0 0.0
        %681 = vmatprep.subr.mxu0 0.0
        %682 = vmatpush2.msra.mxu0 0.0
        %683 = vmatprep.subr.mxu0 0.0
        %684 = vmatpush2.msra.mxu0 0.0
        %685 = vmatprep.subr.mxu0 0.0
        %686 = vmatpush2.msra.mxu0 0.0
        %687 = vmatprep.subr.mxu0 0.0
        %688 = vmatpush2.msra.mxu0 0.0
        %689 = vmatprep.subr.mxu0 0.0
        %690 = vmatpush2.msra.mxu0 0.0
        %691 = vmatprep.mubr.f32.mxu0 0.0
        %692 = vmatmul.mubr.f32.gmra.mxu0 %v456
        %v693 = vpop.f32.mrf.mxu0
        %v694 = vadd.f32 %v625, %v693
        %v695 = vpop.f32.mrf.mxu0
        %696 = vdwg.mxu0
        %697 = vst.msk [vmem:[%s434] sm:$0xff] %vm528, %v694
        %s698 = sand.u32 %s134, 1
        %s699 = scalar_lea.sflag [#allocation5], %s698
        %s700 = sand.u32 %s134, 1
        %s701 = smul.addr %s700, 8
        %s702 = scalar_lea.vmem [#allocation4], %s701
        %s703 = sand.u32 %s23, 1
        %s704 = scalar_lea.sflag [#allocation7], %s703
        %s705 = sand.u32 %s164, 1
        %s706 = smul.addr %s705, 8
        %s707 = scalar_lea.vmem [#allocation6], %s706
        %s708 = sand.u32 %s23, 1
        %s709 = scalar_lea.sflag [#allocation7], %s708
        %s710 = sand.u32 %s194, 1
        %s711 = smul.addr %s710, 8
        %s712 = scalar_lea.vmem [#allocation8], %s711
        // Predicated region
        $region105: #{tpu_custom_call.1} parent=95 // pred_check
          %p713 = pneg %p144
        $region106: #{tpu_custom_call.1} parent=95 // pred_check_branch
          %715 = sbr.rel (%p713) target = $region108
        $region107: #{tpu_custom_call.1} parent=95 // pred_region
          %s717 = ssub.s32 128, 128
          %718 = vsyncadd %s699, %s717
          %s719 = sadd.s32 %s29, %s30
          %s720 = smul.addr %s28, 4
          %s721 = sadd.s32 %s719, %s720
          %s722 = smul.addr %s721, 128
          %s723 = scalar_lea.hbm %s3, %s722
          %s725 = sshll.u32 %s702, 4
          %s726 = int_to_ptr.vmem [resolvable:$true] %s725
          %728 = dma.vmem_to_hbm [thread:$0]  %s726, 128, %s723, %s699
        $region108: #{tpu_custom_call.1} parent=95 // pred_fallthru
          _
        // Predicated region
        $region109: #{tpu_custom_call.1} parent=95 // pred_check
          %p729 = pneg %p174
        $region110: #{tpu_custom_call.1} parent=95 // pred_check_branch
          %731 = sbr.rel (%p729) target = $region112
        $region111: #{tpu_custom_call.1} parent=95 // pred_region
          %s733 = ssub.s32 128, 128
          %734 = vsyncadd %s704, %s733
          %s735 = sadd.s32 %s29, %s30
          %s736 = smul.addr %s28, 4
          %s737 = sadd.s32 %s735, %s736
          %s738 = smul.addr %s737, 128
          %s739 = scalar_lea.hbm %s4, %s738
          %s741 = sshll.u32 %s707, 4
          %s742 = int_to_ptr.vmem [resolvable:$true] %s741
          %744 = dma.vmem_to_hbm [thread:$0]  %s742, 128, %s739, %s704
        $region112: #{tpu_custom_call.1} parent=95 // pred_fallthru
          _
        // Predicated region
        $region113: #{tpu_custom_call.1} parent=95 // pred_check
          %p745 = pneg %p204
        $region114: #{tpu_custom_call.1} parent=95 // pred_check_branch
          %747 = sbr.rel (%p745) target = $region116
        $region115: #{tpu_custom_call.1} parent=95 // pred_region
          %s749 = ssub.s32 128, 128
          %750 = vsyncadd %s709, %s749
          %s751 = sadd.s32 %s29, %s30
          %s752 = smul.addr %s28, 4
          %s753 = sadd.s32 %s751, %s752
          %s754 = smul.addr %s753, 128
          %s755 = scalar_lea.hbm %s5, %s754
          %s757 = sshll.u32 %s712, 4
          %s758 = int_to_ptr.vmem [resolvable:$true] %s757
          %760 = dma.vmem_to_hbm [thread:$0]  %s758, 128, %s755, %s709
        $region116: #{tpu_custom_call.1} parent=95 // pred_fallthru
          _
      $region96: #{tpu_custom_call.1} parent=5 // pred_fallthru
        _
      %p761 = scmp.le.s32.totalorder 2, %s18
      // Predicated region
      $region117: #{tpu_custom_call.1} parent=5 // pred_check
        %p762 = pneg %p761
      $region118: #{tpu_custom_call.1} parent=5 // pred_check_branch
        %764 = sbr.rel (%p762) target = $region120
      $region119: #{tpu_custom_call.1} parent=5 // pred_region
        %s765 = ssub.s32 %s18, 2
        // Predicated region
        $region121: #{tpu_custom_call.1} parent=119 // pred_check
          %p766 = pneg %p150
        $region122: #{tpu_custom_call.1} parent=119 // pred_check_branch
          %768 = sbr.rel (%p766) target = $region124
        $region123: #{tpu_custom_call.1} parent=119 // pred_region
          %s769 = sand.u32 %s135, 1
          %s770 = scalar_lea.sflag [#allocation5], %s769
          %s771 = sand.u32 %s135, 1
          %s772 = smul.addr %s771, 8
          %s773 = scalar_lea.vmem [#allocation4], %s772
          %774 = dma.done %s770, 128
        $region124: #{tpu_custom_call.1} parent=119 // pred_fallthru
          _
        // Predicated region
        $region125: #{tpu_custom_call.1} parent=119 // pred_check
          %p775 = pneg %p180
        $region126: #{tpu_custom_call.1} parent=119 // pred_check_branch
          %777 = sbr.rel (%p775) target = $region128
        $region127: #{tpu_custom_call.1} parent=119 // pred_region
          %s778 = sand.u32 %s24, 1
          %s779 = scalar_lea.sflag [#allocation7], %s778
          %s780 = sand.u32 %s165, 1
          %s781 = smul.addr %s780, 8
          %s782 = scalar_lea.vmem [#allocation6], %s781
          %783 = dma.done %s779, 128
        $region128: #{tpu_custom_call.1} parent=119 // pred_fallthru
          _
        // Predicated region
        $region129: #{tpu_custom_call.1} parent=119 // pred_check
          %p784 = pneg %p210
        $region130: #{tpu_custom_call.1} parent=119 // pred_check_branch
          %786 = sbr.rel (%p784) target = $region132
        $region131: #{tpu_custom_call.1} parent=119 // pred_region
          %s787 = sand.u32 %s24, 1
          %s788 = scalar_lea.sflag [#allocation7], %s787
          %s789 = sand.u32 %s195, 1
          %s790 = smul.addr %s789, 8
          %s791 = scalar_lea.vmem [#allocation8], %s790
          %792 = dma.done %s788, 128
        $region132: #{tpu_custom_call.1} parent=119 // pred_fallthru
          _
      $region120: #{tpu_custom_call.1} parent=5 // pred_fallthru
        _
    $region6: #{tpu_custom_call.1} parent=1 // loop_footer
      %s22 = sadd.s32 1, %s18
    $region7: #{tpu_custom_call.1} parent=1 // loop_footer_branch
      %17 = sbr.rel target = $region3
    $region8: #{tpu_custom_call.1} parent=1 // loop_exit
      _
    %793 = vsyncpa [#allocation5], 1
    %s794 = scalar_lea.sflag [#allocation5], 1
    %795 = vsyncpa %s794, 1
    %796 = vsyncpa [#allocation7], 1
    %s797 = scalar_lea.sflag [#allocation7], 1
    %798 = vsyncpa %s797, 1

</llo_original>
